<compile_context>
chip_gen: v6e
topology: v6e:2x2x1
jax: 0.10.0
libtpu: 0.0.40
codegen_flags: <defaults>
</compile_context>

<pallas_src>
import math
import jax
import jax.numpy as jnp
from jax.experimental import pallas as pl
from jax.experimental.pallas import tpu as pltpu


def _round_up(x, m):
    return (x + m - 1) // m * m


# ---------------------------------------------------------------------------
# Pass 1: conv-as-GEMM + per-tile BN partial statistics (sum, sum of squares).
# ---------------------------------------------------------------------------
def _conv_stats_kernel(patches_ref, w_ref, conv_ref, stats_ref):
    # patches_ref: [tile_m, K_pad] bf16 ; w_ref: [K_pad, E_pad] bf16
    # conv_ref:    [tile_m, E_pad] f32  ; stats_ref: [1, 8, E_pad] f32
    acc = jnp.dot(patches_ref[...], w_ref[...],
                  preferred_element_type=jnp.float32)      # MXU, f32 accumulate
    conv_ref[...] = acc
    s = jnp.sum(acc, axis=0, keepdims=True)                # [1, E_pad]
    sq = jnp.sum(acc * acc, axis=0, keepdims=True)         # [1, E_pad]
    pad = jnp.zeros((6, acc.shape[1]), jnp.float32)        # sublane-align to 8
    stats_ref[...] = jnp.concatenate([s, sq, pad], axis=0)[None]


# ---------------------------------------------------------------------------
# Pass 2: apply folded BatchNorm affine: out = conv * scale + shift.
# ---------------------------------------------------------------------------
def _bn_apply_kernel(conv_ref, scale_ref, shift_ref, out_ref):
    out_ref[...] = conv_ref[...] * scale_ref[...] + shift_ref[...]


# ---------------------------------------------------------------------------
# Host-side glue.
# ---------------------------------------------------------------------------
def _im2col_nhwc(x_nchw, kh, kw, stride, ph, pw):
    """[N,C,H,W] -> patches [N*Hout*Wout, kh*kw*C] (feature order kh, kw, C).

    Built from an NHWC view so no large transpose of the patch tensor is
    required (only the small input transpose).
    """
    n, c, h, w = x_nchw.shape
    x = jnp.transpose(x_nchw, (0, 2, 3, 1)).astype(jnp.float32)
    xp = jnp.pad(x, ((0, 0), (ph, ph), (pw, pw), (0, 0)))
    h_out = (h + 2 * ph - kh) // stride + 1
    w_out = (w + 2 * pw - kw) // stride + 1
    cols = []
    for i in range(kh):
        for j in range(kw):
            cols.append(xp[:, i:i + stride * h_out:stride,
                           j:j + stride * w_out:stride, :])        # [N,Ho,Wo,C]
    patches = jnp.concatenate(cols, axis=-1)                       # [N,Ho,Wo,kh*kw*C]
    return patches.reshape(n * h_out * w_out, kh * kw * c), h_out, w_out


def overlap_patch_embed(x, conv_w, conv_b, bn_gamma, bn_beta, *,
                        stride, eps=1e-5, tile_m=512):
    """x: [N,C,H,W]. conv_w: [E,C,kh,kw]. Returns [N,E,Hout,Wout] (f32)."""
    del conv_b  # A per-channel conv bias cancels exactly under training-mode BN.
    n, c, h, w = x.shape
    e, c2, kh, kw = conv_w.shape
    assert c == c2
    ph, pw = kh // 2, kw // 2

    patches, h_out, w_out = _im2col_nhwc(x, kh, kw, stride, ph, pw)
    m_true, k_true = patches.shape

    # TPU-friendly padding: K -> multiple of 128 (MXU), E -> 128 (lane-dense
    # stores), M -> multiple of tile_m (sublane-aligned tiles).
    k_pad = _round_up(k_true, 128)
    e_pad = _round_up(e, 128)
    tile_m = min(tile_m, _round_up(m_true, 8))
    m_pad = _round_up(m_true, tile_m)
    num_tiles = m_pad // tile_m

    # bf16 MXU operands; accumulation stays f32 inside the kernel.
    patches_p = jnp.pad(
        patches, ((0, m_pad - m_true), (0, k_pad - k_true))).astype(jnp.bfloat16)
    w_mat = jnp.transpose(conv_w, (2, 3, 1, 0)).reshape(k_true, e).astype(jnp.float32)
    w_p = jnp.pad(w_mat, ((0, k_pad - k_true), (0, e_pad - e))).astype(jnp.bfloat16)

    conv_out, partials = pl.pallas_call(
        _conv_stats_kernel,
        out_shape=(jax.ShapeDtypeStruct((m_pad, e_pad), jnp.float32),
                   jax.ShapeDtypeStruct((num_tiles, 8, e_pad), jnp.float32)),
        grid_spec=pltpu.PrefetchScalarGridSpec(
            num_scalar_prefetch=0,
            grid=(num_tiles,),
            in_specs=[
                pl.BlockSpec((tile_m, k_pad), lambda i: (i, 0)),
                pl.BlockSpec((k_pad, e_pad), lambda i: (0, 0)),
            ],
            out_specs=[
                pl.BlockSpec((tile_m, e_pad), lambda i: (i, 0)),
                pl.BlockSpec((1, 8, e_pad), lambda i: (i, 0, 0)),
            ]),
        compiler_params=pltpu.CompilerParams(
            dimension_semantics=("parallel",)),
        cost_estimate=pl.CostEstimate(
            flops=2 * m_pad * k_pad * e_pad,
            transcendentals=0,
            bytes_accessed=(m_pad * k_pad * 2 + k_pad * e_pad * 2
                            + m_pad * e_pad * 4 + num_tiles * 8 * e_pad * 4)),
    )(patches_p, w_p)

    # Tiny cross-tile reduction + fold BN into per-channel scale/shift.
    total = jnp.sum(partials[:, 0, :], axis=0)        # [E_pad]
    total_sq = jnp.sum(partials[:, 1, :], axis=0)     # [E_pad]
    inv_m = 1.0 / float(m_true)                       # padded rows contribute 0
    mean = total * inv_m
    var = jnp.maximum(total_sq * inv_m - mean * mean, 0.0)   # biased variance
    g_pad = jnp.pad(bn_gamma.astype(jnp.float32), (0, e_pad - e))
    b_pad = jnp.pad(bn_beta.astype(jnp.float32), (0, e_pad - e))
    scale = (g_pad * jax.lax.rsqrt(var + eps)).reshape(1, e_pad)
    shift = (b_pad - mean * scale[0]).reshape(1, e_pad)

    out_flat = pl.pallas_call(
        _bn_apply_kernel,
        out_shape=jax.ShapeDtypeStruct((m_pad, e_pad), jnp.float32),
        grid_spec=pltpu.PrefetchScalarGridSpec(
            num_scalar_prefetch=0,
            grid=(num_tiles,),
            in_specs=[
                pl.BlockSpec((tile_m, e_pad), lambda i: (i, 0)),
                pl.BlockSpec((1, e_pad), lambda i: (0, 0)),
                pl.BlockSpec((1, e_pad), lambda i: (0, 0)),
            ],
            out_specs=pl.BlockSpec((tile_m, e_pad), lambda i: (i, 0))),
        compiler_params=pltpu.CompilerParams(
            dimension_semantics=("parallel",)),
        cost_estimate=pl.CostEstimate(
            flops=2 * m_pad * e_pad,
            transcendentals=0,
            bytes_accessed=2 * m_pad * e_pad * 4 + 2 * e_pad * 4),
    )(conv_out, scale, shift)

    # [M, E_pad] -> slice off padding -> [N, Hout, Wout, E] -> NCHW.
    out = out_flat[:m_true, :e].reshape(n, h_out, w_out, e)
    return jnp.transpose(out, (0, 3, 1, 2))


if __name__ == "__main__":
    # Small but consistent with OverlapPatchEmbed defaults.
    img_size, patch_size, stride, in_chans, embed_dim = 16, 7, 4, 4, 32

    key = jax.random.PRNGKey(0)
    kx, kw_ = jax.random.split(key)

    x = jax.random.normal(kx, (2, in_chans, img_size, img_size), dtype=jnp.float32)

    # Deterministic init mirroring _init_weights:
    fan_out = patch_size * patch_size * embed_dim
    conv_w = jax.random.normal(
        kw_, (embed_dim, in_chans, patch_size, patch_size), dtype=jnp.float32
    ) * math.sqrt(2.0 / fan_out)
    conv_b = jnp.zeros((embed_dim,), jnp.float32)
    bn_gamma = jnp.ones((embed_dim,), jnp.float32)
    bn_beta = jnp.zeros((embed_dim,), jnp.float32)

    out = overlap_patch_embed(x, conv_w, conv_b, bn_gamma, bn_beta, stride=stride)
    out = jax.block_until_ready(out)

    h_out = (img_size + 2 * (patch_size // 2) - patch_size) // stride + 1
    assert out.shape == (2, embed_dim, h_out, h_out)

    # Plain-JAX fp32 reference (loose tolerance: bf16 MXU operands).
    ref_conv = jax.lax.conv_general_dilated(
        x, conv_w, window_strides=(stride, stride),
        padding=((patch_size // 2, patch_size // 2),
                 (patch_size // 2, patch_size // 2)),
        dimension_numbers=("NCHW", "OIHW", "NCHW"),
    ) + conv_b[None, :, None, None]
    mean = ref_conv.mean(axis=(0, 2, 3), keepdims=True)
    var = ref_conv.var(axis=(0, 2, 3), keepdims=True)
    ref = (ref_conv - mean) * jax.lax.rsqrt(var + 1e-5) \
        * bn_gamma[None, :, None, None] + bn_beta[None, :, None, None]
    assert jnp.allclose(out, ref, atol=5e-2, rtol=5e-2), \
        float(jnp.max(jnp.abs(out - ref)))

    print("KERNEL_OK")
</pallas_src>

<mosaic_0001>
module attributes {stable_mosaic.version = 11 : i64} {
  func.func @_conv_stats_kernel(%arg0: i32, %arg1: memref<32x256xbf16, #tpu.memory_space<vmem>>, %arg2: memref<256x128xbf16, #tpu.memory_space<vmem>>, %arg3: memref<32x128xf32, #tpu.memory_space<vmem>>, %arg4: memref<1x8x128xf32, #tpu.memory_space<vmem>>) attributes {dimension_semantics = [#tpu.dimension_semantics<parallel>], iteration_bounds = array<i64: 1>, scalar_prefetch = 0 : i64, scratch_operands = 0 : i64, tpu.core_type = #tpu.core_type<tc>, window_params = [{transform_indices = @transform_0, window_bounds = array<i64: 32, 256>}, {pipeline_mode = #tpu.pipeline_mode<synchronous>, transform_indices = @transform_1, window_bounds = array<i64: 256, 128>}, {transform_indices = @transform_2, window_bounds = array<i64: 32, 128>}, {transform_indices = @transform_3, window_bounds = array<i64: 1, 8, 128>}]} {
    %c0 = arith.constant 0 : index
    %c0_0 = arith.constant 0 : index
    %0 = vector.load %arg1[%c0, %c0_0] : memref<32x256xbf16, #tpu.memory_space<vmem>>, vector<32x256xbf16>
    %c0_1 = arith.constant 0 : index
    %c0_2 = arith.constant 0 : index
    %1 = vector.load %arg2[%c0_1, %c0_2] : memref<256x128xbf16, #tpu.memory_space<vmem>>, vector<256x128xbf16>
    %cst = arith.constant dense<0.000000e+00> : vector<32x128xf32>
    %2 = tpu.matmul %0, %1, %cst {dimension_numbers = #tpu.dot_dimension_numbers<[1], [0], [0], [1], [0, 0, 1, 1], [], []>} : vector<32x256xbf16>, vector<256x128xbf16>, vector<32x128xf32> -> vector<32x128xf32>
    %c0_3 = arith.constant 0 : index
    %c0_4 = arith.constant 0 : index
    %3 = vector.load %arg3[%c0_3, %c0_4] : memref<32x128xf32, #tpu.memory_space<vmem>>, vector<32x128xf32>
    tpu.vector_store %arg3[%c0_3, %c0_4], %2 {strides = array<i32>} : memref<32x128xf32, #tpu.memory_space<vmem>>, vector<32x128xf32>,
    %cst_5 = arith.constant dense<0.000000e+00> : vector<128xf32>
    %4 = vector.multi_reduction <add>, %2, %cst_5 [0] : vector<32x128xf32> to vector<128xf32>
    %5 = vector.shape_cast %4 : vector<128xf32> to vector<1x128xf32>
    %6 = arith.mulf %2, %2 : vector<32x128xf32>
    %cst_6 = arith.constant dense<0.000000e+00> : vector<128xf32>
    %7 = vector.multi_reduction <add>, %6, %cst_6 [0] : vector<32x128xf32> to vector<128xf32>
    %8 = vector.shape_cast %7 : vector<128xf32> to vector<1x128xf32>
    %cst_7 = arith.constant 0.000000e+00 : f32
    %9 = vector.broadcast %cst_7 : f32 to vector<6x128xf32>
    %10 = tpu.concatenate %5, %8, %9 in 0 : vector<1x128xf32>, vector<1x128xf32>, vector<6x128xf32> -> vector<8x128xf32>
    %11 = vector.shape_cast %10 : vector<8x128xf32> to vector<1x8x128xf32>
    %c0_8 = arith.constant 0 : index
    %c0_9 = arith.constant 0 : index
    %c0_10 = arith.constant 0 : index
    %12 = vector.load %arg4[%c0_8, %c0_9, %c0_10] : memref<1x8x128xf32, #tpu.memory_space<vmem>>, vector<1x8x128xf32>
    tpu.vector_store %arg4[%c0_8, %c0_9, %c0_10], %11 {strides = array<i32>} : memref<1x8x128xf32, #tpu.memory_space<vmem>>, vector<1x8x128xf32>,
    return
  }
  func.func @transform_0(%arg0: i32) -> (i32, i32) {
    %c0_i32 = arith.constant 0 : i32
    %c0_i32_0 = arith.constant 0 : i32
    return %arg0, %c0_i32 : i32, i32
  }
  func.func @transform_1(%arg0: i32) -> (i32, i32) {
    %c0_i32 = arith.constant 0 : i32
    %c0_i32_0 = arith.constant 0 : i32
    %c0_i32_1 = arith.constant 0 : i32
    return %c0_i32, %c0_i32_0 : i32, i32
  }
  func.func @transform_2(%arg0: i32) -> (i32, i32) {
    %c0_i32 = arith.constant 0 : i32
    %c0_i32_0 = arith.constant 0 : i32
    return %arg0, %c0_i32 : i32, i32
  }
  func.func @transform_3(%arg0: i32) -> (i32, i32, i32) {
    %c0_i32 = arith.constant 0 : i32
    %c0_i32_0 = arith.constant 0 : i32
    %c0_i32_1 = arith.constant 0 : i32
    return %arg0, %c0_i32, %c0_i32_0 : i32, i32, i32
  }
}

</mosaic_0001>

<llo_original>
// kernel: tpu_custom_call.1
$region0: #{tpu_custom_call.1}
  #allocation0 [shape = 'u32[]', space=smem, size = 0x4, offset = 0x4, fixed_abs, tag = 'smem constant byte address 0x4 - core index']
  #allocation1 [shape = 'u32[144,128]{1,0:T(1,128)}', space=vmem, size = 0x12000, scoped, tag = 'internal scratch']
  %s0 = inlined_call_operand.hbm [shape: bf16[32,256], index: 0, kind: input, shape index: {}]
  %s1 = inlined_call_operand.hbm [shape: bf16[256,128], index: 1, kind: input, shape index: {}]
  %s2 = inlined_call_operand.hbm [shape: f32[32,128], index: 2, kind: output, shape index: {0}]
  %s3 = inlined_call_operand.hbm [shape: f32[1,8,128], index: 3, kind: output, shape index: {1}]
  %4 = xla_tuple %s2, %s3
  %s5 = sld [smem:[#allocation0]]
  $region34: #{tpu_custom_call.1} parent=0
    _
  %s7 = ssub.s32 1, %s5
  %s8 = scalar_select 0, %s7, %s5
  $region1: #{tpu_custom_call.1} parent=0
    #allocation2 [shape = 'u8[16384]{0}', space=vmem, size = 0x4000, scoped, tag = 'input window, operand 0, single buffered']
    #allocation3 [shape = 's32[1]{0}', space=sflag, size = 0x4, scoped, tag = 'scoped memory for tpu_custom_call.1']
    #allocation4 [shape = 's32[1]{0}', space=sflag, size = 0x4, scoped, tag = 'scoped memory for tpu_custom_call.1']
    #allocation5 [shape = 'u8[65536]{0}', space=vmem, size = 0x10000, scoped, tag = 'input window, operand 1, single buffered']
    #allocation6 [shape = 's32[1]{0}', space=sflag, size = 0x4, scoped, tag = 'scoped memory for tpu_custom_call.1']
    #allocation7 [shape = 'u8[16384]{0}', space=vmem, size = 0x4000, scoped, tag = 'output window, operand 0, single buffered']
    #allocation8 [shape = 'u8[4096]{0}', space=vmem, size = 0x1000, scoped, tag = 'output window, operand 1, single buffered']
    #allocation9 [shape = 's32[1]{0}', space=sflag, size = 0x4, scoped, tag = 'scoped memory for tpu_custom_call.1']
    %9 = vsyncpa [#allocation3], 0
    %10 = vsyncpa [#allocation6], 0
    %11 = vsyncpa [#allocation4], 0
    %12 = vsyncpa [#allocation9], 0
    // Predicated region
    $region2: #{tpu_custom_call.1} parent=1 // pred_check
      _
    $region3: #{tpu_custom_call.1} parent=1 // pred_check_branch
      %14 = sbr.rel (0) target = $region5
    $region4: #{tpu_custom_call.1} parent=1 // pred_region
      %s16 = ssub.s32 512, 512
      %17 = vsyncadd [#allocation3], %s16
      %s18 = sshll.u32 [#allocation2], 4
      %s19 = int_to_ptr.vmem [resolvable:$true] %s18
      %24 = dma.hbm_to_vmem [thread:$0]  %s0, 512, %s19, [#allocation3], 128, 128, 8
    $region5: #{tpu_custom_call.1} parent=1 // pred_fallthru
      _
    // Predicated region
    $region6: #{tpu_custom_call.1} parent=1 // pred_check
      _
    $region7: #{tpu_custom_call.1} parent=1 // pred_check_branch
      %26 = sbr.rel (0) target = $region9
    $region8: #{tpu_custom_call.1} parent=1 // pred_region
      %s28 = ssub.s32 2048, 2048
      %29 = vsyncadd [#allocation6], %s28
      %s30 = sshll.u32 [#allocation5], 4
      %s31 = int_to_ptr.vmem [resolvable:$true] %s30
      %36 = dma.hbm_to_vmem [thread:$0]  %s1, 2048, %s31, [#allocation6], 64, 64, 4
    $region9: #{tpu_custom_call.1} parent=1 // pred_fallthru
      _
    // Predicated region
    $region10: #{tpu_custom_call.1} parent=1 // pred_check
      _
    $region11: #{tpu_custom_call.1} parent=1 // pred_check_branch
      %38 = sbr.rel (0) target = $region13
    $region12: #{tpu_custom_call.1} parent=1 // pred_region
      %39 = dma.done [#allocation3], 512
    $region13: #{tpu_custom_call.1} parent=1 // pred_fallthru
      _
    // Predicated region
    $region14: #{tpu_custom_call.1} parent=1 // pred_check
      _
    $region15: #{tpu_custom_call.1} parent=1 // pred_check_branch
      %41 = sbr.rel (0) target = $region17
    $region16: #{tpu_custom_call.1} parent=1 // pred_region
      %42 = dma.done [#allocation6], 2048
    $region17: #{tpu_custom_call.1} parent=1 // pred_fallthru
      _
    %v44 = vld [vmem:[#allocation2] sm:$0xff]
    %v45 = vld [vmem:[#allocation2 + $0x8] sm:$0xff]
    %v46 = vld [vmem:[#allocation2 + $0x10] sm:$0xff]
    %v47 = vld [vmem:[#allocation2 + $0x18] sm:$0xff]
    %v48 = vld [vmem:[#allocation5] sm:$0xf]
    %v49 = vld [vmem:[#allocation5 + $0x4] sm:$0xf]
    %v50 = vld [vmem:[#allocation5 + $0x8] sm:$0xf]
    %v51 = vld [vmem:[#allocation5 + $0xc] sm:$0xf]
    %v52 = vld [vmem:[#allocation5 + $0x10] sm:$0xf]
    %v53 = vld [vmem:[#allocation5 + $0x14] sm:$0xf]
    %v54 = vld [vmem:[#allocation5 + $0x18] sm:$0xf]
    %v55 = vld [vmem:[#allocation5 + $0x1c] sm:$0xf]
    %v56 = vld [vmem:[#allocation5 + $0x20] sm:$0xf]
    %v57 = vld [vmem:[#allocation5 + $0x24] sm:$0xf]
    %v58 = vld [vmem:[#allocation5 + $0x28] sm:$0xf]
    %v59 = vld [vmem:[#allocation5 + $0x2c] sm:$0xf]
    %v60 = vld [vmem:[#allocation5 + $0x30] sm:$0xf]
    %v61 = vld [vmem:[#allocation5 + $0x34] sm:$0xf]
    %v62 = vld [vmem:[#allocation5 + $0x38] sm:$0xf]
    %v63 = vld [vmem:[#allocation5 + $0x3c] sm:$0xf]
    %v64 = vld [vmem:[#allocation5 + $0x40] sm:$0xf]
    %v65 = vld [vmem:[#allocation5 + $0x44] sm:$0xf]
    %v66 = vld [vmem:[#allocation5 + $0x48] sm:$0xf]
    %v67 = vld [vmem:[#allocation5 + $0x4c] sm:$0xf]
    %v68 = vld [vmem:[#allocation5 + $0x50] sm:$0xf]
    %v69 = vld [vmem:[#allocation5 + $0x54] sm:$0xf]
    %v70 = vld [vmem:[#allocation5 + $0x58] sm:$0xf]
    %v71 = vld [vmem:[#allocation5 + $0x5c] sm:$0xf]
    %v72 = vld [vmem:[#allocation5 + $0x60] sm:$0xf]
    %v73 = vld [vmem:[#allocation5 + $0x64] sm:$0xf]
    %v74 = vld [vmem:[#allocation5 + $0x68] sm:$0xf]
    %v75 = vld [vmem:[#allocation5 + $0x6c] sm:$0xf]
    %v76 = vld [vmem:[#allocation5 + $0x70] sm:$0xf]
    %v77 = vld [vmem:[#allocation5 + $0x74] sm:$0xf]
    %v78 = vld [vmem:[#allocation5 + $0x78] sm:$0xf]
    %v79 = vld [vmem:[#allocation5 + $0x7c] sm:$0xf]
    %v84 = vunpack.c.l.b16 %v44
    %v85 = vunpack.c.h.b16 %v44
    %v86 = vunpack.c.l.b16 %v45
    %v87 = vunpack.c.h.b16 %v45
    %v88 = vunpack.c.l.b16 %v46
    %v89 = vunpack.c.h.b16 %v46
    %v90 = vunpack.c.l.b16 %v47
    %v91 = vunpack.c.h.b16 %v47
    %v92 = vpack.c.b16 %v86, %v84
    %v93 = vpack.c.b16 %v87, %v85
    %v94 = vpack.c.b16 %v90, %v88
    %v95 = vpack.c.b16 %v91, %v89
    %v132 = vunpack.c.l.b16 %v48
    %v133 = vunpack.c.l.b16 %v49
    %v134 = vunpack.c.l.b16 %v50
    %v135 = vunpack.c.l.b16 %v51
    %v136 = vunpack.c.l.b16 %v52
    %v137 = vunpack.c.l.b16 %v53
    %v138 = vunpack.c.l.b16 %v54
    %v139 = vunpack.c.l.b16 %v55
    %v140 = vunpack.c.l.b16 %v56
    %v141 = vunpack.c.l.b16 %v57
    %v142 = vunpack.c.l.b16 %v58
    %v143 = vunpack.c.l.b16 %v59
    %v144 = vunpack.c.l.b16 %v60
    %v145 = vunpack.c.l.b16 %v61
    %v146 = vunpack.c.l.b16 %v62
    %v147 = vunpack.c.l.b16 %v63
    %v148 = vunpack.c.l.b16 %v64
    %v149 = vunpack.c.l.b16 %v65
    %v150 = vunpack.c.l.b16 %v66
    %v151 = vunpack.c.l.b16 %v67
    %v152 = vunpack.c.l.b16 %v68
    %v153 = vunpack.c.l.b16 %v69
    %v154 = vunpack.c.l.b16 %v70
    %v155 = vunpack.c.l.b16 %v71
    %v156 = vunpack.c.l.b16 %v72
    %v157 = vunpack.c.l.b16 %v73
    %v158 = vunpack.c.l.b16 %v74
    %v159 = vunpack.c.l.b16 %v75
    %v160 = vunpack.c.l.b16 %v76
    %v161 = vunpack.c.l.b16 %v77
    %v162 = vunpack.c.l.b16 %v78
    %v163 = vunpack.c.l.b16 %v79
    %v164 = vpack.c.b16 %v133, %v132
    %v165 = vpack.c.b16 %v135, %v134
    %v166 = vpack.c.b16 %v137, %v136
    %v167 = vpack.c.b16 %v139, %v138
    %v168 = vpack.c.b16 %v141, %v140
    %v169 = vpack.c.b16 %v143, %v142
    %v170 = vpack.c.b16 %v145, %v144
    %v171 = vpack.c.b16 %v147, %v146
    %v172 = vpack.c.b16 %v149, %v148
    %v173 = vpack.c.b16 %v151, %v150
    %v174 = vpack.c.b16 %v153, %v152
    %v175 = vpack.c.b16 %v155, %v154
    %v176 = vpack.c.b16 %v157, %v156
    %v177 = vpack.c.b16 %v159, %v158
    %v178 = vpack.c.b16 %v161, %v160
    %v179 = vpack.c.b16 %v163, %v162
    %196 = vmatprep.subr.bf16.mxu0 0
    %197 = vmatpush1.bf16.msra.mxu0 %v171
    %198 = vmatprep.subr.bf16.mxu0 0
    %199 = vmatpush1.bf16.msra.mxu0 %v170
    %200 = vmatprep.subr.bf16.mxu0 0
    %201 = vmatpush1.bf16.msra.mxu0 %v169
    %202 = vmatprep.subr.bf16.mxu0 0
    %203 = vmatpush1.bf16.msra.mxu0 %v168
    %204 = vmatprep.subr.bf16.mxu0 0
    %205 = vmatpush1.bf16.msra.mxu0 %v167
    %206 = vmatprep.subr.bf16.mxu0 0
    %207 = vmatpush1.bf16.msra.mxu0 %v166
    %208 = vmatprep.subr.bf16.mxu0 0
    %209 = vmatpush1.bf16.msra.mxu0 %v165
    %210 = vmatprep.subr.bf16.mxu0 0
    %211 = vmatpush1.bf16.msra.mxu0 %v164
    %212 = vmatprep.subr.bf16.mxu0 0
    %213 = vmatpush2.bf16.msra.mxu0 %v179
    %214 = vmatprep.subr.bf16.mxu0 0
    %215 = vmatpush2.bf16.msra.mxu0 %v178
    %216 = vmatprep.subr.bf16.mxu0 0
    %217 = vmatpush2.bf16.msra.mxu0 %v177
    %218 = vmatprep.subr.bf16.mxu0 0
    %219 = vmatpush2.bf16.msra.mxu0 %v176
    %220 = vmatprep.subr.bf16.mxu0 0
    %221 = vmatpush2.bf16.msra.mxu0 %v175
    %222 = vmatprep.subr.bf16.mxu0 0
    %223 = vmatpush2.bf16.msra.mxu0 %v174
    %224 = vmatprep.subr.bf16.mxu0 0
    %225 = vmatpush2.bf16.msra.mxu0 %v173
    %226 = vmatprep.subr.bf16.mxu0 0
    %227 = vmatpush2.bf16.msra.mxu0 %v172
    %228 = vmatprep.mubr.bf16.mxu0 %v93
    %229 = vmatmul.mubr.bf16.gmra.mxu0 %v92
    %v230 = vpop.f32.mrf.mxu0
    %v231 = vadd.f32 0.0, %v230
    %v232 = vpop.f32.mrf.mxu0
    %v233 = vpop.f32.mrf.mxu0
    %v234 = vadd.f32 0.0, %v233
    %v235 = vpop.f32.mrf.mxu0
    %236 = vmatprep.mubr.bf16.mxu0 %v95
    %237 = vmatmul.mubr.bf16.gmra.mxu0 %v94
    %v238 = vpop.f32.mrf.mxu0
    %v239 = vadd.f32 0.0, %v238
    %v240 = vpop.f32.mrf.mxu0
    %v241 = vpop.f32.mrf.mxu0
    %v242 = vadd.f32 0.0, %v241
    %v243 = vpop.f32.mrf.mxu0
    %244 = vdwg.mxu0
    %245 = vst [vmem:[#allocation7] sm:$0xff] %v231
    %246 = vst [vmem:[#allocation7 + $0x8] sm:$0xff] %v234
    %247 = vst [vmem:[#allocation7 + $0x10] sm:$0xff] %v239
    %248 = vst [vmem:[#allocation7 + $0x18] sm:$0xff] %v242
    %v249 = vadd.f32 %v231, %v234
    %v250 = vadd.f32 %v249, %v239
    %v251 = vadd.f32 %v250, %v242
    %v252 = vrot.slane %v251, 4
    %v253 = vadd.f32 %v251, %v252
    %v254 = vrot.slane %v253, 2
    %v255 = vadd.f32 %v253, %v254
    %v256 = vrot.slane %v255, 1
    %v257 = vadd.f32 %v255, %v256
    %v258 = vmul.f32 %v231, %v231
    %v259 = vmul.f32 %v234, %v234
    %v260 = vmul.f32 %v239, %v239
    %v261 = vmul.f32 %v242, %v242
    %v262 = vadd.f32 %v258, %v259
    %v263 = vadd.f32 %v262, %v260
    %v264 = vadd.f32 %v263, %v261
    %v265 = vrot.slane %v264, 4
    %v266 = vadd.f32 %v264, %v265
    %v267 = vrot.slane %v266, 2
    %v268 = vadd.f32 %v266, %v267
    %v269 = vrot.slane %v268, 1
    %v270 = vadd.f32 %v268, %v269
    %vm271 = vcmask 1040384
    %v272 = vsel %vm271, %v257, %v270
    %vm273 = vcmask 1041408
    %v274 = vsel %vm273, %v272, 0.0
    %275 = vst [vmem:[#allocation8] sm:$0xff] %v274
    // Predicated region
    $region18: #{tpu_custom_call.1} parent=1 // pred_check
      _
    $region19: #{tpu_custom_call.1} parent=1 // pred_check_branch
      %277 = sbr.rel (0) target = $region21
    $region20: #{tpu_custom_call.1} parent=1 // pred_region
      %s279 = ssub.s32 512, 512
      %280 = vsyncadd [#allocation4], %s279
      %s281 = sshll.u32 [#allocation7], 4
      %s282 = int_to_ptr.vmem [resolvable:$true] %s281
      %287 = dma.vmem_to_hbm [thread:$0]  %s282, 512, %s2, [#allocation4], 128, 128, 8
    $region21: #{tpu_custom_call.1} parent=1 // pred_fallthru
      _
    // Predicated region
    $region22: #{tpu_custom_call.1} parent=1 // pred_check
      _
    $region23: #{tpu_custom_call.1} parent=1 // pred_check_branch
      %289 = sbr.rel (0) target = $region25
    $region24: #{tpu_custom_call.1} parent=1 // pred_region
      %s291 = ssub.s32 128, 128
      %292 = vsyncadd [#allocation9], %s291
      %s294 = sshll.u32 [#allocation8], 4
      %s295 = int_to_ptr.vmem [resolvable:$true] %s294
      %297 = dma.vmem_to_hbm [thread:$0]  %s295, 128, %s3, [#allocation9]
    $region25: #{tpu_custom_call.1} parent=1 // pred_fallthru
      _
    // Predicated region
    $region26: #{tpu_custom_call.1} parent=1 // pred_check
      _
    $region27: #{tpu_custom_call.1} parent=1 // pred_check_branch
      %299 = sbr.rel (0) target = $region29
    $region28: #{tpu_custom_call.1} parent=1 // pred_region
      %300 = dma.done [#allocation4], 512
    $region29: #{tpu_custom_call.1} parent=1 // pred_fallthru
      _
    // Predicated region
    $region30: #{tpu_custom_call.1} parent=1 // pred_check
      _
    $region31: #{tpu_custom_call.1} parent=1 // pred_check_branch
      %302 = sbr.rel (0) target = $region33
    $region32: #{tpu_custom_call.1} parent=1 // pred_region
      %303 = dma.done [#allocation9], 128
    $region33: #{tpu_custom_call.1} parent=1 // pred_fallthru
      _
    %304 = vsyncpa [#allocation3], 1
    %305 = vsyncpa [#allocation6], 1
    %306 = vsyncpa [#allocation4], 1
    %307 = vsyncpa [#allocation9], 1

</llo_original>
